<compile_context>
chip_gen: v7x
topology: tpu7x:2x2x1
jax: 0.10.0
libtpu: 0.0.40
codegen_flags: <defaults>
</compile_context>

<pallas_src>
import jax
import jax.numpy as jnp
from jax.experimental import pallas as pl
from jax.experimental.pallas import tpu as pltpu


def _logit_columns(a, b, wa_ref, wb_ref, wd_ref, bias_ref, num_label):
    """Per-class logit columns ([TB,1] each), computed on the VPU/XLU.

    a, b     : [TB, E] f32 embeddings
    w*_ref   : [C, E]  classifier weight slices (for a, b, |a-b|)
    bias_ref : SMEM (1, C) f32
    logit[:, c] = sum_e (a*W_a[c] + b*W_b[c] + |a-b|*W_d[c]) + bias[c]
    """
    d = jnp.abs(a - b)  # |u - v| feature (concatenation_sent_difference=True)
    cols = []
    for c in range(num_label):  # num_label is a tiny static constant -> unrolled
        contrib = (a * wa_ref[c:c + 1, :]
                   + b * wb_ref[c:c + 1, :]
                   + d * wd_ref[c:c + 1, :])                      # [TB, E]
        col = jnp.sum(contrib, axis=-1, keepdims=True)            # [TB, 1]
        cols.append(col + bias_ref[0, c])
    return cols


def _make_loss_kernel(total_b, num_label):
    def kernel(emba_ref, embb_ref, wa_ref, wb_ref, wd_ref, bias_ref,
               labels_ref, loss_ref):
        i = pl.program_id(0)

        @pl.when(i == 0)
        def _init():
            loss_ref[...] = jnp.zeros_like(loss_ref)

        a = emba_ref[...].astype(jnp.float32)                     # [TB, E]
        b = embb_ref[...].astype(jnp.float32)                     # [TB, E]
        cols = _logit_columns(a, b, wa_ref, wb_ref, wd_ref, bias_ref, num_label)

        # Numerically stable CE without materializing log-softmax:
        #   per_example = logsumexp(z) - z[label],  z = logits - max(logits)
        m = cols[0]
        for c in range(1, num_label):
            m = jnp.maximum(m, cols[c])
        s = jnp.zeros_like(m)
        for c in range(num_label):
            s = s + jnp.exp(cols[c] - m)
        lse = jnp.log(s)                                          # [TB, 1]

        labels = labels_ref[...]                                  # [TB, 1] int32
        label_z = jnp.zeros_like(m)
        for c in range(num_label):
            label_z = label_z + jnp.where(labels == c, cols[c] - m, 0.0)

        # Mask rows past the true batch size (last, possibly partial, tile).
        tb = a.shape[0]
        row = jax.lax.broadcasted_iota(jnp.int32, (tb, 1), 0) + i * tb
        per_example = jnp.where(row < total_b, lse - label_z, 0.0)

        loss_ref[...] += jnp.sum(per_example, keepdims=True)      # [1, 1]

        @pl.when(i == pl.num_programs(0) - 1)
        def _finalize():
            loss_ref[...] = loss_ref[...] / jnp.float32(total_b)

    return kernel


def _make_logits_kernel(num_label):
    def kernel(emba_ref, embb_ref, wa_ref, wb_ref, wd_ref, bias_ref, out_ref):
        a = emba_ref[...].astype(jnp.float32)
        b = embb_ref[...].astype(jnp.float32)
        cols = _logit_columns(a, b, wa_ref, wb_ref, wd_ref, bias_ref, num_label)
        tb = a.shape[0]
        col_iota = jax.lax.broadcasted_iota(jnp.int32, (tb, num_label), 1)
        out = jnp.zeros((tb, num_label), jnp.float32)
        for c in range(num_label):
            out = out + jnp.where(col_iota == c, cols[c], 0.0)
        out_ref[...] = out.astype(out_ref.dtype)
    return kernel


def softmax_loss_forward(emb_a, emb_b, weight, bias, labels=None, *, block_b=None):
    """Fused SoftmaxLoss forward.

    emb_a, emb_b : [B, E] sentence embeddings (outputs of the external encoder).
    weight       : [C, 3E] classifier weight (PyTorch nn.Linear layout).
    bias         : [C]     classifier bias.
    labels       : [B] int labels -> scalar mean CE loss; None -> [B, C] logits.
    """
    # TODO(synk): self.model (the sentence encoder) is an arbitrary external
    # module; emb_a / emb_b are taken as its precomputed outputs. Module
    # defaults implemented: concatenation_sent_difference=True,
    # concatenation_sent_multiplication=False (the (u, v, |u-v|) triple).
    B, E = emb_a.shape
    C = weight.shape[0]
    assert weight.shape == (C, 3 * E), weight.shape

    # View the classifier weight as three [C, E] slices (folds the feature
    # concat into the kernel; tiny one-time wrapper slices, no [B,3E] in HBM).
    w_a = weight[:, 0:E]
    w_b = weight[:, E:2 * E]
    w_d = weight[:, 2 * E:3 * E]
    bias2d = bias.reshape(1, C).astype(jnp.float32)

    # Batch tile: big enough to amortize per-step overhead, sublane-aligned.
    # (On v7x, budget against 64 MiB VMEM and double-buffered inputs; the
    # default 512-row tile with E-wide features leaves ample headroom.)
    if block_b is None:
        block_b = B if B <= 512 else 512
    if block_b < B:
        block_b = max(8, (block_b // 8) * 8)
    nb = pl.cdiv(B, block_b)

    feat_spec = pl.BlockSpec((block_b, E), lambda i: (i, 0))
    w_spec = pl.BlockSpec((C, E), lambda i: (0, 0))
    bias_spec = pl.BlockSpec(memory_space=pltpu.SMEM)

    if labels is None:
        return pl.pallas_call(
            _make_logits_kernel(C),
            out_shape=jax.ShapeDtypeStruct((B, C), jnp.float32),
            grid=(nb,),
            in_specs=[feat_spec, feat_spec, w_spec, w_spec, w_spec, bias_spec],
            out_specs=pl.BlockSpec((block_b, C), lambda i: (i, 0)),
            compiler_params=pltpu.CompilerParams(
                dimension_semantics=("parallel",)),
        )(emb_a, emb_b, w_a, w_b, w_d, bias2d)

    labels2d = labels.reshape(B, 1).astype(jnp.int32)
    label_spec = pl.BlockSpec((block_b, 1), lambda i: (i, 0))

    loss = pl.pallas_call(
        _make_loss_kernel(B, C),
        out_shape=jax.ShapeDtypeStruct((1, 1), jnp.float32),
        grid=(nb,),
        in_specs=[feat_spec, feat_spec, w_spec, w_spec, w_spec, bias_spec,
                  label_spec],
        # (1,1) loss block stays resident across the whole batch grid and acts
        # as the accumulator -> the batch axis must be "arbitrary".
        out_specs=pl.BlockSpec((1, 1), lambda i: (0, 0)),
        compiler_params=pltpu.CompilerParams(
            dimension_semantics=("arbitrary",)),
    )(emb_a, emb_b, w_a, w_b, w_d, bias2d, labels2d)
    return loss[0, 0]


if __name__ == "__main__":
    B = 8           # batch
    E = 32          # embedding dimension (small synthetic stand-in for 768)
    NUM_LABEL = 2   # module default num_label=2

    key = jax.random.PRNGKey(0)
    k1, k2, k3, k4, k5 = jax.random.split(key, 5)

    emb_a = jax.random.normal(k1, (B, E), dtype=jnp.float32)
    emb_b = jax.random.normal(k2, (B, E), dtype=jnp.float32)
    weight = jax.random.normal(k3, (NUM_LABEL, 3 * E), dtype=jnp.float32) * 0.05
    bias = jax.random.normal(k4, (NUM_LABEL,), dtype=jnp.float32) * 0.01
    labels = jax.random.randint(k5, (B,), 0, NUM_LABEL, dtype=jnp.int32)

    # fused loss path
    loss = softmax_loss_forward(emb_a, emb_b, weight, bias, labels)
    loss = jax.block_until_ready(loss)

    # pure-JAX reference
    feats = jnp.concatenate([emb_a, emb_b, jnp.abs(emb_a - emb_b)], axis=-1)
    logits_ref = feats @ weight.T + bias
    logp = jax.nn.log_softmax(logits_ref, axis=-1)
    ref_loss = -jnp.mean(jnp.take_along_axis(logp, labels[:, None], axis=-1))
    assert jnp.allclose(loss, ref_loss, rtol=1e-5, atol=1e-5), (loss, ref_loss)

    # labels=None path (returns logits, matching the module semantics)
    logits = softmax_loss_forward(emb_a, emb_b, weight, bias, None)
    logits = jax.block_until_ready(logits)
    assert jnp.allclose(logits, logits_ref, rtol=1e-5, atol=1e-5)

    print("KERNEL_OK")
</pallas_src>

<mosaic_0001>
module attributes {stable_mosaic.version = 11 : i64} {
  func.func @kernel(%arg0: i32, %arg1: memref<8x32xf32, #tpu.memory_space<vmem>>, %arg2: memref<8x32xf32, #tpu.memory_space<vmem>>, %arg3: memref<2x32xf32, #tpu.memory_space<vmem>>, %arg4: memref<2x32xf32, #tpu.memory_space<vmem>>, %arg5: memref<2x32xf32, #tpu.memory_space<vmem>>, %arg6: memref<1x2xf32, #tpu.memory_space<smem>>, %arg7: memref<8x1xi32, #tpu.memory_space<vmem>>, %arg8: memref<1x1xf32, #tpu.memory_space<vmem>>) attributes {dimension_semantics = [#tpu.dimension_semantics<arbitrary>], iteration_bounds = array<i64: 1>, scalar_prefetch = 0 : i64, scratch_operands = 0 : i64, tpu.core_type = #tpu.core_type<tc>, window_params = [{transform_indices = @transform_0, window_bounds = array<i64: 8, 32>}, {transform_indices = @transform_1, window_bounds = array<i64: 8, 32>}, {pipeline_mode = #tpu.pipeline_mode<synchronous>, transform_indices = @transform_2, window_bounds = array<i64: 2, 32>}, {pipeline_mode = #tpu.pipeline_mode<synchronous>, transform_indices = @transform_3, window_bounds = array<i64: 2, 32>}, {pipeline_mode = #tpu.pipeline_mode<synchronous>, transform_indices = @transform_4, window_bounds = array<i64: 2, 32>}, {transform_indices = @transform_5, window_bounds = array<i64: 1, 2>}, {transform_indices = @transform_6, window_bounds = array<i64: 8, 1>}, {pipeline_mode = #tpu.pipeline_mode<synchronous>, transform_indices = @transform_7, window_bounds = array<i64: 1, 1>}]} {
    %c0_i32 = arith.constant 0 : i32
    %0 = arith.cmpi eq, %arg0, %c0_i32 : i32
    %1 = arith.extui %0 : i1 to i32
    %c0_i32_0 = arith.constant 0 : i32
    %2 = arith.cmpi ne, %1, %c0_i32_0 : i32
    scf.if %2 {
      %cst_36 = arith.constant 0.000000e+00 : f32
      %82 = vector.broadcast %cst_36 : f32 to vector<1x1xf32>
      %c0_37 = arith.constant 0 : index
      %c0_38 = arith.constant 0 : index
      %83 = vector.load %arg8[%c0_37, %c0_38] : memref<1x1xf32, #tpu.memory_space<vmem>>, vector<1x1xf32>
      tpu.vector_store %arg8[%c0_37, %c0_38], %82 {strides = array<i32>} : memref<1x1xf32, #tpu.memory_space<vmem>>, vector<1x1xf32>,
    } else {
    }
    %c0 = arith.constant 0 : index
    %c0_1 = arith.constant 0 : index
    %3 = vector.load %arg1[%c0, %c0_1] : memref<8x32xf32, #tpu.memory_space<vmem>>, vector<8x32xf32>
    %c0_2 = arith.constant 0 : index
    %c0_3 = arith.constant 0 : index
    %4 = vector.load %arg2[%c0_2, %c0_3] : memref<8x32xf32, #tpu.memory_space<vmem>>, vector<8x32xf32>
    %5 = arith.subf %3, %4 : vector<8x32xf32>
    %6 = math.absf %5 : vector<8x32xf32>
    %c0_4 = arith.constant 0 : index
    %c0_5 = arith.constant 0 : index
    %7 = vector.load %arg3[%c0_4, %c0_5] : memref<2x32xf32, #tpu.memory_space<vmem>>, vector<1x32xf32>
    %8 = vector.broadcast %7 : vector<1x32xf32> to vector<8x32xf32>
    %9 = arith.mulf %3, %8 : vector<8x32xf32>
    %c0_6 = arith.constant 0 : index
    %c0_7 = arith.constant 0 : index
    %10 = vector.load %arg4[%c0_6, %c0_7] : memref<2x32xf32, #tpu.memory_space<vmem>>, vector<1x32xf32>
    %11 = vector.broadcast %10 : vector<1x32xf32> to vector<8x32xf32>
    %12 = arith.mulf %4, %11 : vector<8x32xf32>
    %13 = arith.addf %9, %12 : vector<8x32xf32>
    %c0_8 = arith.constant 0 : index
    %c0_9 = arith.constant 0 : index
    %14 = vector.load %arg5[%c0_8, %c0_9] : memref<2x32xf32, #tpu.memory_space<vmem>>, vector<1x32xf32>
    %15 = vector.broadcast %14 : vector<1x32xf32> to vector<8x32xf32>
    %16 = arith.mulf %6, %15 : vector<8x32xf32>
    %17 = arith.addf %13, %16 : vector<8x32xf32>
    %cst = arith.constant dense<0.000000e+00> : vector<8xf32>
    %18 = vector.multi_reduction <add>, %17, %cst [1] : vector<8x32xf32> to vector<8xf32>
    %19 = vector.shape_cast %18 : vector<8xf32> to vector<8x1xf32>
    %c0_10 = arith.constant 0 : index
    %c0_11 = arith.constant 0 : index
    %20 = memref.load %arg6[%c0_10, %c0_11] : memref<1x2xf32, #tpu.memory_space<smem>>
    %21 = vector.broadcast %20 : f32 to vector<8x1xf32>
    %22 = arith.addf %19, %21 : vector<8x1xf32>
    %c1 = arith.constant 1 : index
    %c0_12 = arith.constant 0 : index
    %23 = vector.load %arg3[%c1, %c0_12] : memref<2x32xf32, #tpu.memory_space<vmem>>, vector<1x32xf32>
    %24 = vector.broadcast %23 : vector<1x32xf32> to vector<8x32xf32>
    %25 = arith.mulf %3, %24 : vector<8x32xf32>
    %c1_13 = arith.constant 1 : index
    %c0_14 = arith.constant 0 : index
    %26 = vector.load %arg4[%c1_13, %c0_14] : memref<2x32xf32, #tpu.memory_space<vmem>>, vector<1x32xf32>
    %27 = vector.broadcast %26 : vector<1x32xf32> to vector<8x32xf32>
    %28 = arith.mulf %4, %27 : vector<8x32xf32>
    %29 = arith.addf %25, %28 : vector<8x32xf32>
    %c1_15 = arith.constant 1 : index
    %c0_16 = arith.constant 0 : index
    %30 = vector.load %arg5[%c1_15, %c0_16] : memref<2x32xf32, #tpu.memory_space<vmem>>, vector<1x32xf32>
    %31 = vector.broadcast %30 : vector<1x32xf32> to vector<8x32xf32>
    %32 = arith.mulf %6, %31 : vector<8x32xf32>
    %33 = arith.addf %29, %32 : vector<8x32xf32>
    %cst_17 = arith.constant dense<0.000000e+00> : vector<8xf32>
    %34 = vector.multi_reduction <add>, %33, %cst_17 [1] : vector<8x32xf32> to vector<8xf32>
    %35 = vector.shape_cast %34 : vector<8xf32> to vector<8x1xf32>
    %c0_18 = arith.constant 0 : index
    %c1_19 = arith.constant 1 : index
    %36 = memref.load %arg6[%c0_18, %c1_19] : memref<1x2xf32, #tpu.memory_space<smem>>
    %37 = vector.broadcast %36 : f32 to vector<8x1xf32>
    %38 = arith.addf %35, %37 : vector<8x1xf32>
    %39 = arith.maximumf %22, %38 : vector<8x1xf32>
    %cst_20 = arith.constant 0.000000e+00 : f32
    %40 = vector.broadcast %cst_20 : f32 to vector<8x1xf32>
    %41 = arith.subf %22, %39 : vector<8x1xf32>
    %42 = math.exp %41 : vector<8x1xf32>
    %43 = arith.addf %40, %42 : vector<8x1xf32>
    %44 = arith.subf %38, %39 : vector<8x1xf32>
    %45 = math.exp %44 : vector<8x1xf32>
    %46 = arith.addf %43, %45 : vector<8x1xf32>
    %47 = math.log %46 : vector<8x1xf32>
    %c0_21 = arith.constant 0 : index
    %c0_22 = arith.constant 0 : index
    %48 = vector.load %arg7[%c0_21, %c0_22] : memref<8x1xi32, #tpu.memory_space<vmem>>, vector<8x1xi32>
    %cst_23 = arith.constant 0.000000e+00 : f32
    %49 = vector.broadcast %cst_23 : f32 to vector<8x1xf32>
    %c0_i32_24 = arith.constant 0 : i32
    %50 = vector.broadcast %c0_i32_24 : i32 to vector<8x1xi32>
    %51 = arith.cmpi eq, %48, %50 : vector<8x1xi32>
    %52 = arith.subf %22, %39 : vector<8x1xf32>
    %cst_25 = arith.constant 0.000000e+00 : f32
    %53 = vector.broadcast %cst_25 : f32 to vector<8x1xf32>
    %54 = arith.select %51, %52, %53 : vector<8x1xi1>, vector<8x1xf32>
    %55 = arith.addf %49, %54 : vector<8x1xf32>
    %c1_i32 = arith.constant 1 : i32
    %56 = vector.broadcast %c1_i32 : i32 to vector<8x1xi32>
    %57 = arith.cmpi eq, %48, %56 : vector<8x1xi32>
    %58 = arith.subf %38, %39 : vector<8x1xf32>
    %cst_26 = arith.constant 0.000000e+00 : f32
    %59 = vector.broadcast %cst_26 : f32 to vector<8x1xf32>
    %60 = arith.select %57, %58, %59 : vector<8x1xi1>, vector<8x1xf32>
    %61 = arith.addf %55, %60 : vector<8x1xf32>
    %62 = tpu.iota {dimensions = array<i32: 0>} : vector<8x1xi32>
    %c8_i32 = arith.constant 8 : i32
    %63 = arith.muli %arg0, %c8_i32 : i32
    %64 = vector.broadcast %63 : i32 to vector<8x1xi32>
    %65 = arith.addi %62, %64 : vector<8x1xi32>
    %c8_i32_27 = arith.constant 8 : i32
    %66 = vector.broadcast %c8_i32_27 : i32 to vector<8x1xi32>
    %67 = arith.cmpi slt, %65, %66 : vector<8x1xi32>
    %68 = arith.subf %47, %61 : vector<8x1xf32>
    %cst_28 = arith.constant 0.000000e+00 : f32
    %69 = vector.broadcast %cst_28 : f32 to vector<8x1xf32>
    %70 = arith.select %67, %68, %69 : vector<8x1xi1>, vector<8x1xf32>
    %c0_29 = arith.constant 0 : index
    %c0_30 = arith.constant 0 : index
    %71 = vector.load %arg8[%c0_29, %c0_30] : memref<1x1xf32, #tpu.memory_space<vmem>>, vector<1x1xf32>
    %72 = vector.shape_cast %70 : vector<8x1xf32> to vector<1x8x1xf32>
    %cst_31 = arith.constant dense<0.000000e+00> : vector<1xf32>
    %73 = vector.multi_reduction <add>, %72, %cst_31 [1, 2] : vector<1x8x1xf32> to vector<1xf32>
    %74 = vector.shape_cast %73 : vector<1xf32> to vector<1x1x1xf32>
    %75 = vector.extract %74[0, 0, 0] : f32 from vector<1x1x1xf32>
    %76 = vector.broadcast %75 : f32 to vector<1x1xf32>
    %77 = arith.addf %71, %76 : vector<1x1xf32>
    %c0_32 = arith.constant 0 : index
    %c0_33 = arith.constant 0 : index
    %78 = vector.load %arg8[%c0_32, %c0_33] : memref<1x1xf32, #tpu.memory_space<vmem>>, vector<1x1xf32>
    tpu.vector_store %arg8[%c0_32, %c0_33], %77 {strides = array<i32>} : memref<1x1xf32, #tpu.memory_space<vmem>>, vector<1x1xf32>,
    %c0_i32_34 = arith.constant 0 : i32
    %79 = arith.cmpi eq, %arg0, %c0_i32_34 : i32
    %80 = arith.extui %79 : i1 to i32
    %c0_i32_35 = arith.constant 0 : i32
    %81 = arith.cmpi ne, %80, %c0_i32_35 : i32
    scf.if %81 {
      %c0_36 = arith.constant 0 : index
      %c0_37 = arith.constant 0 : index
      %82 = vector.load %arg8[%c0_36, %c0_37] : memref<1x1xf32, #tpu.memory_space<vmem>>, vector<1x1xf32>
      %cst_38 = arith.constant 8.000000e+00 : f32
      %83 = vector.broadcast %cst_38 : f32 to vector<1x1xf32>
      %84 = arith.divf %82, %83 : vector<1x1xf32>
      %c0_39 = arith.constant 0 : index
      %c0_40 = arith.constant 0 : index
      %85 = vector.load %arg8[%c0_39, %c0_40] : memref<1x1xf32, #tpu.memory_space<vmem>>, vector<1x1xf32>
      tpu.vector_store %arg8[%c0_39, %c0_40], %84 {strides = array<i32>} : memref<1x1xf32, #tpu.memory_space<vmem>>, vector<1x1xf32>,
    } else {
    }
    return
  }
  func.func @transform_0(%arg0: i32) -> (i32, i32) {
    %c0_i32 = arith.constant 0 : i32
    %c0_i32_0 = arith.constant 0 : i32
    return %arg0, %c0_i32 : i32, i32
  }
  func.func @transform_1(%arg0: i32) -> (i32, i32) {
    %c0_i32 = arith.constant 0 : i32
    %c0_i32_0 = arith.constant 0 : i32
    return %arg0, %c0_i32 : i32, i32
  }
  func.func @transform_2(%arg0: i32) -> (i32, i32) {
    %c0_i32 = arith.constant 0 : i32
    %c0_i32_0 = arith.constant 0 : i32
    %c0_i32_1 = arith.constant 0 : i32
    return %c0_i32, %c0_i32_0 : i32, i32
  }
  func.func @transform_3(%arg0: i32) -> (i32, i32) {
    %c0_i32 = arith.constant 0 : i32
    %c0_i32_0 = arith.constant 0 : i32
    %c0_i32_1 = arith.constant 0 : i32
    return %c0_i32, %c0_i32_0 : i32, i32
  }
  func.func @transform_4(%arg0: i32) -> (i32, i32) {
    %c0_i32 = arith.constant 0 : i32
    %c0_i32_0 = arith.constant 0 : i32
    %c0_i32_1 = arith.constant 0 : i32
    return %c0_i32, %c0_i32_0 : i32, i32
  }
  func.func @transform_5(%arg0: i32) -> (i32, i32) {
    %c0_i32 = arith.constant 0 : i32
    %c0_i32_0 = arith.constant 0 : i32
    %c0_i32_1 = arith.constant 0 : i32
    return %c0_i32, %c0_i32_0 : i32, i32
  }
  func.func @transform_6(%arg0: i32) -> (i32, i32) {
    %c0_i32 = arith.constant 0 : i32
    %c0_i32_0 = arith.constant 0 : i32
    return %arg0, %c0_i32 : i32, i32
  }
  func.func @transform_7(%arg0: i32) -> (i32, i32) {
    %c0_i32 = arith.constant 0 : i32
    %c0_i32_0 = arith.constant 0 : i32
    %c0_i32_1 = arith.constant 0 : i32
    return %c0_i32, %c0_i32_0 : i32, i32
  }
}

</mosaic_0001>

<llo_original>
// kernel: tpu_custom_call.1
$region0: #{tpu_custom_call.1}
  #allocation0 [shape = 'u32[]', space=smem, size = 0x4, offset = 0x4, fixed_abs, tag = 'smem constant byte address 0x4 - core index']
  #allocation1 [shape = 'u32[144,128]{1,0:T(1,128)}', space=vmem, size = 0x12000, scoped, tag = 'internal scratch']
  %s0 = inlined_call_operand.vmem [shape: f32[8,32], index: 0, kind: input, shape index: {}]
  %s1 = inlined_call_operand.hbm [shape: f32[8,32], index: 1, kind: input, shape index: {}]
  %s2 = inlined_call_operand.vmem [shape: f32[2,32], index: 2, kind: input, shape index: {}]
  %s3 = inlined_call_operand.vmem [shape: f32[2,32], index: 3, kind: input, shape index: {}]
  %s4 = inlined_call_operand.vmem [shape: f32[2,32], index: 4, kind: input, shape index: {}]
  %s5 = inlined_call_operand.vmem [shape: f32[1,2], index: 5, kind: input, shape index: {}]
  %s6 = inlined_call_operand.vmem [shape: s32[8,1], index: 6, kind: input, shape index: {}]
  %s7 = inlined_call_operand.hbm [shape: f32[1,1], index: 7, kind: output, shape index: {}]
  %s8 = sld [smem:[#allocation0]]
  $region54: #{tpu_custom_call.1} parent=0
    _
  %s10 = ssub.s32 1, %s8
  %s11 = scalar_select 0, %s10, %s8
  $region1: #{tpu_custom_call.1} parent=0
    #allocation2 [shape = 'u8[4096]{0}', space=vmem, size = 0x1000, scoped, tag = 'input window, operand 1, single buffered']
    #allocation3 [shape = 's32[1]{0}', space=sflag, size = 0x4, scoped, tag = 'scoped memory for tpu_custom_call.1']
    #allocation4 [shape = 's32[1]{0}', space=sflag, size = 0x4, scoped, tag = 'scoped memory for tpu_custom_call.1']
    #allocation5 [shape = 's32[1]{0}', space=sflag, size = 0x4, scoped, tag = 'scoped memory for tpu_custom_call.1']
    #allocation6 [shape = 'u8[512]{0}', space=smem, size = 0x200, scoped, tag = 'input window, operand 5, single buffered']
    #allocation7 [shape = 'u8[512]{0}', space=vmem, size = 0x400, scoped, tag = 'output window, operand 0, single buffered']
    %12 = vsyncpa [#allocation3], 0
    %13 = vsyncpa [#allocation5], 0
    %14 = vsyncpa [#allocation4], 0
    // Predicated region
    $region2: #{tpu_custom_call.1} parent=1 // pred_check
      _
    $region3: #{tpu_custom_call.1} parent=1 // pred_check_branch
      %16 = sbr.rel (0) target = $region5
    $region4: #{tpu_custom_call.1} parent=1 // pred_region
      _
    $region5: #{tpu_custom_call.1} parent=1 // pred_fallthru
      _
    // Predicated region
    $region6: #{tpu_custom_call.1} parent=1 // pred_check
      _
    $region7: #{tpu_custom_call.1} parent=1 // pred_check_branch
      %18 = sbr.rel (0) target = $region9
    $region8: #{tpu_custom_call.1} parent=1 // pred_region
      %s20 = ssub.s32 128, 128
      %21 = vsyncadd [#allocation3], %s20
      %s23 = sshll.u32 [#allocation2], 4
      %s24 = int_to_ptr.vmem [resolvable:$true] %s23
      %26 = dma.hbm_to_vmem [thread:$0]  %s1, 128, %s24, [#allocation3]
    $region9: #{tpu_custom_call.1} parent=1 // pred_fallthru
      _
    // Predicated region
    $region10: #{tpu_custom_call.1} parent=1 // pred_check
      _
    $region11: #{tpu_custom_call.1} parent=1 // pred_check_branch
      %28 = sbr.rel (0) target = $region13
    $region12: #{tpu_custom_call.1} parent=1 // pred_region
      _
    $region13: #{tpu_custom_call.1} parent=1 // pred_fallthru
      _
    // Predicated region
    $region14: #{tpu_custom_call.1} parent=1 // pred_check
      _
    $region15: #{tpu_custom_call.1} parent=1 // pred_check_branch
      %30 = sbr.rel (0) target = $region17
    $region16: #{tpu_custom_call.1} parent=1 // pred_region
      _
    $region17: #{tpu_custom_call.1} parent=1 // pred_fallthru
      _
    // Predicated region
    $region18: #{tpu_custom_call.1} parent=1 // pred_check
      _
    $region19: #{tpu_custom_call.1} parent=1 // pred_check_branch
      %32 = sbr.rel (0) target = $region21
    $region20: #{tpu_custom_call.1} parent=1 // pred_region
      _
    $region21: #{tpu_custom_call.1} parent=1 // pred_fallthru
      _
    // Predicated region
    $region22: #{tpu_custom_call.1} parent=1 // pred_check
      _
    $region23: #{tpu_custom_call.1} parent=1 // pred_check_branch
      %34 = sbr.rel (0) target = $region25
    $region24: #{tpu_custom_call.1} parent=1 // pred_region
      %s36 = ssub.s32 16, 16
      %37 = vsyncadd [#allocation5], %s36
      %s39 = sshll.u32 %s5, 4
      %s40 = int_to_ptr.vmem [resolvable:$true] %s39
      %42 = dma.vmem_to_smem %s40, 16, [#allocation6], [#allocation5]
    $region25: #{tpu_custom_call.1} parent=1 // pred_fallthru
      _
    // Predicated region
    $region26: #{tpu_custom_call.1} parent=1 // pred_check
      _
    $region27: #{tpu_custom_call.1} parent=1 // pred_check_branch
      %44 = sbr.rel (0) target = $region29
    $region28: #{tpu_custom_call.1} parent=1 // pred_region
      _
    $region29: #{tpu_custom_call.1} parent=1 // pred_fallthru
      _
    // Predicated region
    $region30: #{tpu_custom_call.1} parent=1 // pred_check
      _
    $region31: #{tpu_custom_call.1} parent=1 // pred_check_branch
      %46 = sbr.rel (0) target = $region33
    $region32: #{tpu_custom_call.1} parent=1 // pred_region
      %47 = dma.done [#allocation3], 128
    $region33: #{tpu_custom_call.1} parent=1 // pred_fallthru
      _
    // Predicated region
    $region34: #{tpu_custom_call.1} parent=1 // pred_check
      _
    $region35: #{tpu_custom_call.1} parent=1 // pred_check_branch
      %49 = sbr.rel (0) target = $region37
    $region36: #{tpu_custom_call.1} parent=1 // pred_region
      %50 = dma.done [#allocation5], 16
    $region37: #{tpu_custom_call.1} parent=1 // pred_fallthru
      _
    %51 = sfence
    %p52 = scmp.eq.s32.totalorder 0, 0
    // Predicated region
    $region38: #{tpu_custom_call.1} parent=1 // pred_check
      %p53 = pneg %p52
    $region39: #{tpu_custom_call.1} parent=1 // pred_check_branch
      %55 = sbr.rel (%p53) target = $region41
    $region40: #{tpu_custom_call.1} parent=1 // pred_region
      %vm56 = vcmask 0
      %57 = vst.msk [vmem:[#allocation7] sm:$0x1] %vm56, 0.0
    $region41: #{tpu_custom_call.1} parent=1 // pred_fallthru
      _
    %v58 = vld [vmem:[%s0] sm:$0xff]
    %v59 = vld [vmem:[#allocation2] sm:$0xff]
    %v60 = vsub.f32 %v58, %v59
    %v61 = vand.u32 2147483647, %v60
    %v62 = vld [vmem:[%s2] sm:$0x1]
    %v63 = vlaneseq
    %v64 = vshrl.u32 %v63, 7
    %v65 = vsub.s32 0, %v64
    %v66 = vrot.slane %v62, %v65
    %v67 = vmul.f32 %v58, %v66
    %v68 = vld [vmem:[%s3] sm:$0x1]
    %v69 = vlaneseq
    %v70 = vshrl.u32 %v69, 7
    %v71 = vsub.s32 0, %v70
    %v72 = vrot.slane %v68, %v71
    %v73 = vmul.f32 %v59, %v72
    %v74 = vadd.f32 %v67, %v73
    %v75 = vld [vmem:[%s4] sm:$0x1]
    %v76 = vlaneseq
    %v77 = vshrl.u32 %v76, 7
    %v78 = vsub.s32 0, %v77
    %v79 = vrot.slane %v75, %v78
    %v80 = vmul.f32 %v61, %v79
    %v81 = vadd.f32 %v74, %v80
    %vm82 = vcmask 261120
    %v83 = vsel %vm82, %v81, 0.0
    %84 = vadd.xlane.f32.xlu0 %v83
    %v85 = vpop.xlane.xlu0 %84
    %s86 = sld [smem:[#allocation6]]
    %v87 = vstv %s86
    %v88 = vadd.f32 %v85, %v87
    %v89 = vld [vmem:[%s2 + $0x1] sm:$0x1]
    %v90 = vlaneseq
    %v91 = vshrl.u32 %v90, 7
    %v92 = vsub.s32 0, %v91
    %v93 = vrot.slane %v89, %v92
    %v94 = vmul.f32 %v58, %v93
    %v95 = vld [vmem:[%s3 + $0x1] sm:$0x1]
    %v96 = vlaneseq
    %v97 = vshrl.u32 %v96, 7
    %v98 = vsub.s32 0, %v97
    %v99 = vrot.slane %v95, %v98
    %v100 = vmul.f32 %v59, %v99
    %v101 = vadd.f32 %v94, %v100
    %v102 = vld [vmem:[%s4 + $0x1] sm:$0x1]
    %v103 = vlaneseq
    %v104 = vshrl.u32 %v103, 7
    %v105 = vsub.s32 0, %v104
    %v106 = vrot.slane %v102, %v105
    %v107 = vmul.f32 %v61, %v106
    %v108 = vadd.f32 %v101, %v107
    %v109 = vsel %vm82, %v108, 0.0
    %110 = vadd.xlane.f32.xlu0 %v109
    %v111 = vpop.xlane.xlu0 %110
    %s112 = sld [smem:[#allocation6 + $0x1]]
    %v113 = vstv %s112
    %v114 = vadd.f32 %v111, %v113
    %v115 = vmax.f32 %v88, %v114
    %v116 = vsub.f32 %v88, %v115
    %v117 = vmul.f32 %v116, 1.442695
    %v118 = vpow.pop %v117
    %v119 = vadd.f32 %v118, 0.0
    %v120 = vsub.f32 %v114, %v115
    %v121 = vmul.f32 %v120, 1.442695
    %v122 = vpow.pop %v121
    %v123 = vadd.f32 %v119, %v122
    %v124 = vlog2.pop %v123
    %v125 = vmul.f32 %v124, 0.6931472
    %v126 = vld [vmem:[%s6] sm:$0xff]
    %vm127 = vcmp.eq.s32.totalorder %v126, 0
    %v128 = vsel %vm127, %v116, 0.0
    %v129 = vadd.f32 %v128, 0.0
    %vm130 = vcmp.eq.s32.totalorder %v126, 1
    %v131 = vsel %vm130, %v120, 0.0
    %v132 = vadd.f32 %v129, %v131
    %v133 = vlaneseq
    %v134 = vshrl.u32 %v133, 7
    %s135 = smul.u32 0, 8
    %v136 = vstv %s135
    %v137 = vadd.s32 %v134, %v136
    %vm138 = vcmp.lt.s32.totalorder %v137, 8
    %v139 = vsub.f32 %v125, %v132
    %v140 = vsel %vm138, %v139, 0.0
    %v141 = vld [vmem:[#allocation7] sm:$0x1]
    %vm142 = vcmask 7168
    %v143 = vsel %vm142, %v140, 0.0
    %144 = vadd.xlane.f32.xlu0 %v143
    %v145 = vpop.xlane.xlu0 %144
    %v146 = vrot.slane %v145, 4
    %v147 = vadd.f32 %v145, %v146
    %v148 = vrot.slane %v147, 2
    %v149 = vadd.f32 %v147, %v148
    %v150 = vrot.slane %v149, 1
    %v151 = vadd.f32 %v149, %v150
    %s152 = vtos %v151
    %v153 = vstv %s152
    %v154 = vadd.f32 %v141, %v153
    %vm155 = vcmask 0
    %156 = vst.msk [vmem:[#allocation7] sm:$0x1] %vm155, %v154
    // Predicated region
    $region42: #{tpu_custom_call.1} parent=1 // pred_check
      %p157 = pneg %p52
    $region43: #{tpu_custom_call.1} parent=1 // pred_check_branch
      %159 = sbr.rel (%p157) target = $region45
    $region44: #{tpu_custom_call.1} parent=1 // pred_region
      %v160 = vld [vmem:[#allocation7] sm:$0x1]
      %v161 = vrcp.pop 8.0
      %v162 = vmul.f32 %v160, %v161
      %163 = vst.msk [vmem:[#allocation7] sm:$0x1] %vm155, %v162
    $region45: #{tpu_custom_call.1} parent=1 // pred_fallthru
      _
    // Predicated region
    $region46: #{tpu_custom_call.1} parent=1 // pred_check
      _
    $region47: #{tpu_custom_call.1} parent=1 // pred_check_branch
      %165 = sbr.rel (0) target = $region49
    $region48: #{tpu_custom_call.1} parent=1 // pred_region
      %s167 = ssub.s32 16, 16
      %168 = vsyncadd [#allocation4], %s167
      %s170 = sshll.u32 [#allocation7], 4
      %s171 = int_to_ptr.vmem [resolvable:$true] %s170
      %173 = dma.vmem_to_hbm [thread:$0]  %s171, 16, %s7, [#allocation4]
    $region49: #{tpu_custom_call.1} parent=1 // pred_fallthru
      _
    // Predicated region
    $region50: #{tpu_custom_call.1} parent=1 // pred_check
      _
    $region51: #{tpu_custom_call.1} parent=1 // pred_check_branch
      %175 = sbr.rel (0) target = $region53
    $region52: #{tpu_custom_call.1} parent=1 // pred_region
      %176 = dma.done [#allocation4], 16
    $region53: #{tpu_custom_call.1} parent=1 // pred_fallthru
      _
    %177 = vsyncpa [#allocation3], 1
    %178 = vsyncpa [#allocation4], 1
    %179 = vsyncpa [#allocation5], 1

</llo_original>
